<compile_context>
chip_gen: v7x
topology: tpu7x:2x2x1
jax: 0.10.0
libtpu: 0.0.40
codegen_flags: <defaults>
</compile_context>

<pallas_src>
import sys
import numpy as np
import jax
import jax.numpy as jnp
from jax.experimental import pallas as pl
from jax.experimental.pallas import tpu as pltpu

# bf16 matmul operands (f32 accumulation, f32 bias/mean/ELU path) for the 4
# hidden layers — native MXU dtype on v6e/v7x, matmul-only on v5e.  Set to
# jnp.float32 for full-f32 parity with the PyTorch module.
MATMUL_DTYPE = jnp.bfloat16

SET_PAD = 128            # fixed per-set padded length (sublane axis, mult of 8)
MAX_SETS_PER_STEP = 8    # sets batched into one grid step (M = B * SET_PAD)
IOU_TILE_M = 512         # IoU output tile, sublane axis
IOU_TILE_N = 1024        # IoU output tile, lane axis


def _round_up(x, m):
    return ((x + m - 1) // m) * m


# ----------------------------------------------------------------------------
# Pallas kernel 1: pairwise IoU (bbox_overlaps, mode='iou', is_aligned=False)
#   boxes1 fed as (m_pad, 4) (row side), boxes2 fed lane-dense as (4, n_pad).
# ----------------------------------------------------------------------------
def _iou_kernel(b1_ref, b2_ref, out_ref):
    b1 = b1_ref[...]                                   # (TM, 4)
    b2 = b2_ref[...]                                   # (4, TN) lane-dense

    x1a, y1a, x2a, y2a = b1[:, 0:1], b1[:, 1:2], b1[:, 2:3], b1[:, 3:4]   # (TM,1)
    x1b, y1b, x2b, y2b = b2[0:1, :], b2[1:2, :], b2[2:3, :], b2[3:4, :]   # (1,TN)

    lt_x = jnp.maximum(x1a, x1b)                       # (TM, TN)
    lt_y = jnp.maximum(y1a, y1b)
    rb_x = jnp.minimum(x2a, x2b)
    rb_y = jnp.minimum(y2a, y2b)

    w = jnp.maximum(rb_x - lt_x + 1.0, 0.0)
    h = jnp.maximum(rb_y - lt_y + 1.0, 0.0)
    overlap = w * h

    area1 = (x2a - x1a + 1.0) * (y2a - y1a + 1.0)      # (TM, 1)
    area2 = (x2b - x1b + 1.0) * (y2b - y1b + 1.0)      # (1, TN)

    # Denominator >= 1 with the +1 pixel convention, so an EUP approx
    # reciprocal + one Newton-Raphson step is safely below the 0.5-threshold
    # flip scale while freeing the (binding) VALU slot.
    # TODO(synk): if callers only ever threshold the IoU matrix, emit the
    # divide-free mask  overlap*(1+t) > t*(area1+area2)  as uint8 instead
    # (cuts output writeback/D2H 4x).
    denom = area1 + area2 - overlap
    r = pl.reciprocal(denom, approx=True)
    r = r * (2.0 - denom * r)                          # one NR refinement
    out_ref[...] = overlap * r


def bbox_overlaps_pallas(bboxes1, bboxes2):
    b1 = jnp.asarray(bboxes1, jnp.float32)
    b2 = jnp.asarray(bboxes2, jnp.float32)
    m, n = int(b1.shape[0]), int(b2.shape[0])

    tm = IOU_TILE_M if m >= IOU_TILE_M else _round_up(m, 8)
    tn = IOU_TILE_N if n >= IOU_TILE_N else _round_up(n, 128)
    m_pad = _round_up(m, tm)
    n_pad = _round_up(n, tn)

    b1_rows = jnp.zeros((m_pad, 4), jnp.float32).at[:m, :].set(b1)
    b2_cols = jnp.zeros((4, n_pad), jnp.float32).at[:, :n].set(b2.T)

    out = pl.pallas_call(
        _iou_kernel,
        out_shape=jax.ShapeDtypeStruct((m_pad, n_pad), jnp.float32),
        grid=(m_pad // tm, n_pad // tn),
        in_specs=[
            pl.BlockSpec((tm, 4), lambda i, j: (i, 0)),
            pl.BlockSpec((4, tn), lambda i, j: (0, j)),
        ],
        out_specs=pl.BlockSpec((tm, tn), lambda i, j: (i, j)),
        compiler_params=pltpu.CompilerParams(
            dimension_semantics=("parallel", "parallel")),
    )(b1_rows, b2_cols)
    return out[:m, :n]


# ----------------------------------------------------------------------------
# Pallas kernel 2: batched, fused DeepsetsHead.set_forward
#   5 x (PermEqui2_mean -> ELU):  x <- elu( x@Wg + b - mean(x@Wl, 0) )
#   B sets per grid step; hidden layers fuse Gamma/Lambda in one matmul;
#   the final out_dim-1 layer uses a slim (2, Dmax) block and writes the
#   prediction lane-dense with no transpose.
# ----------------------------------------------------------------------------
def _elu(x):
    return jnp.where(x > 0, x, jnp.expm1(jnp.minimum(x, 0.0)))


def _deepsets_kernel(x_ref, mask_ref, inv_ref, w_ref, b_ref,
                     wlast_ref, blast_ref, out_ref):
    # x_ref:     (B, N_PAD, Dmax)   matmul dtype, padded rows/cols/sets are zero
    # mask_ref:  (B, N_PAD, 1)      f32, 1.0 valid row / 0.0 padding
    # inv_ref:   (B, 1, 1)          f32, 1 / true set size
    # w_ref:     (L-1, Dmax, 2Dmax) fused [Gamma | Lambda] hidden weights
    # b_ref:     (L-1, 1, Dmax)     f32 hidden biases
    # wlast_ref: (2, Dmax)          f32: row0 = Gamma_5, row1 = Lambda_5
    # blast_ref: (1, 1)             f32
    # out_ref:   (B, 1, N_PAD)      f32 lane-dense predictions
    b_sets, n_pad, d_max = x_ref.shape
    n_hidden = w_ref.shape[0]

    mask = mask_ref[...]                               # (B, N_PAD, 1)
    inv_n = inv_ref[...]                               # (B, 1, 1)

    xv = x_ref[...]
    x_dtype = xv.dtype
    x2d = xv.reshape(b_sets * n_pad, d_max)            # single big-M MXU operand
    x3 = None
    for l in range(n_hidden):                          # static -> fully unrolled
        w = w_ref[l]                                   # (Dmax, 2*Dmax)  [Wg | Wl]
        t = jnp.dot(x2d, w, preferred_element_type=jnp.float32)   # (B*N, 2Dmax)
        t3 = t.reshape(b_sets, n_pad, 2 * d_max)
        gamma = t3[:, :, :d_max] + b_ref[l]            # (B, N_PAD, Dmax)
        # padded rows of x are exactly zero -> their Lambda rows are zero, so a
        # plain per-set sum divided by the true length is the masked mean.
        lam_mean = jnp.sum(t3[:, :, d_max:], axis=1, keepdims=True) * inv_n
        x3 = _elu(gamma - lam_mean) * mask             # f32; re-zero padded rows
        x2d = x3.reshape(b_sets * n_pad, d_max).astype(x_dtype)

    # Final PermEqui2_mean (true out_dim = 1), slim epilogue: contraction over
    # the feature axis with a (2, Dmax) block, arranged so the prediction lands
    # directly as a lane-dense (B, 1, N_PAD) row — no 2*Dmax-wide matmul and no
    # transpose.  Padded rows/sets are garbage here but the host never reads
    # them (and their Lambda contributions are zero because x3 was masked).
    w_last = jnp.broadcast_to(wlast_ref[...], (b_sets, 2, d_max))   # f32
    t_last = jnp.einsum('bkd,bnd->bkn', w_last, x3,
                        preferred_element_type=jnp.float32)         # (B, 2, N_PAD)
    gamma_r = t_last[:, 0:1, :] + blast_ref[...]                    # (B, 1, N_PAD)
    lam_mean_r = jnp.sum(t_last[:, 1:2, :], axis=2, keepdims=True) * inv_n
    out_ref[...] = _elu(gamma_r - lam_mean_r)


def set_forward_batched(x_b, mask_b, inv_b, w_slab, b_slab, w_last, b_last,
                        sets_per_step):
    """x_b:    (S_pad, N_PAD, Dmax) MATMUL_DTYPE, padded rows/cols/sets zero.
       mask_b: (S_pad, N_PAD, 1)    f32 valid-row mask.
       inv_b:  (S_pad, 1, 1)        f32 reciprocal of the true set size.
       returns (S_pad, 1, N_PAD)    f32 lane-dense predictions."""
    s_pad, n_pad, d_max = x_b.shape
    bsz = sets_per_step
    num_steps = s_pad // bsz

    resident_bytes = sum(int(a.size) * a.dtype.itemsize
                         for a in (w_slab, b_slab, w_last, b_last))
    step_bytes = bsz * n_pad * (x_b.dtype.itemsize * d_max + 4 + 4)
    vmem_limit = int(min(max(2 * resident_bytes + 3 * step_bytes + (16 << 20),
                             32 << 20), 96 << 20))

    def build(single_buffer_weights):
        # Resident (constant index_map) weight/bias slabs: single-buffered so
        # they are not doubled in VMEM (critical at production dims on v7x).
        res_kw = ({'pipeline_mode': pl.Buffered(1)}
                  if single_buffer_weights else {})
        in_specs = [
            pl.BlockSpec((bsz, n_pad, d_max), lambda s: (s, 0, 0)),
            pl.BlockSpec((bsz, n_pad, 1), lambda s: (s, 0, 0)),
            pl.BlockSpec((bsz, 1, 1), lambda s: (s, 0, 0)),
            pl.BlockSpec(w_slab.shape, lambda s: (0, 0, 0), **res_kw),
            pl.BlockSpec(b_slab.shape, lambda s: (0, 0, 0), **res_kw),
            pl.BlockSpec(w_last.shape, lambda s: (0, 0), **res_kw),
            pl.BlockSpec(b_last.shape, lambda s: (0, 0), **res_kw),
        ]
        return pl.pallas_call(
            _deepsets_kernel,
            out_shape=jax.ShapeDtypeStruct((s_pad, 1, n_pad), jnp.float32),
            grid=(num_steps,),
            in_specs=in_specs,
            out_specs=pl.BlockSpec((bsz, 1, n_pad), lambda s: (s, 0, 0)),
            compiler_params=pltpu.CompilerParams(
                dimension_semantics=("parallel",),   # shards steps across v7x TCs
                vmem_limit_bytes=vmem_limit),
        )

    args = (x_b, mask_b, inv_b, w_slab, b_slab, w_last, b_last)
    try:
        return build(True)(*args)
    except Exception:
        # Fallback if single-buffered resident specs are rejected by this
        # jax/Mosaic version: default double-buffering (correct, more VMEM).
        return build(False)(*args)


# ----------------------------------------------------------------------------
# Parameter initialization + packing
# ----------------------------------------------------------------------------
def init_permequi(key, in_dim, out_dim):
    k1, k2, k3 = jax.random.split(key, 3)
    bound = 1.0 / np.sqrt(in_dim)
    wg = jax.random.uniform(k1, (in_dim, out_dim), jnp.float32, -bound, bound)
    bg = jax.random.uniform(k2, (1, out_dim), jnp.float32, -bound, bound)
    wl = jax.random.uniform(k3, (in_dim, out_dim), jnp.float32, -bound, bound)
    return (wg, bg, wl)


def init_deepsets_head(key, indim, ds1, ds2, ds3, ds4):
    dims = [(indim, ds1), (ds1, ds2), (ds2, ds3), (ds3, ds4), (ds4, 1)]
    keys = jax.random.split(key, len(dims))
    return [init_permequi(k, i, o) for k, (i, o) in zip(keys, dims)]


def pack_params(params, matmul_dtype=jnp.float32):
    """Hidden layers (all but the last): one zero-padded fused slab
    (L-1, Dmax, 2*Dmax) with Gamma in cols [:Dmax] and Lambda in [Dmax:], plus a
    bias slab (L-1, 1, Dmax).  Final layer (true out_dim = 1): slim (2, Dmax)
    f32 block (row0 = Gamma weight, row1 = Lambda weight) and a (1,1) bias —
    avoids a full-width last matmul.  Zero padding keeps unused feature columns
    exactly 0 through every layer, so no per-layer slicing is needed in-kernel."""
    hidden = params[:-1]
    wg_last, bg_last, wl_last = params[-1]
    d_max = 1
    for wg, _, _ in params:
        d_max = max(d_max, wg.shape[0], wg.shape[1])
    num_hidden = len(hidden)
    w_slab = np.zeros((num_hidden, d_max, 2 * d_max), np.float32)
    b_slab = np.zeros((num_hidden, 1, d_max), np.float32)
    for l, (wg, bg, wl) in enumerate(hidden):
        din, dout = wg.shape
        w_slab[l, :din, :dout] = np.asarray(wg)
        w_slab[l, :din, d_max:d_max + dout] = np.asarray(wl)
        b_slab[l, 0, :dout] = np.asarray(bg).reshape(-1)
    w_last = np.zeros((2, d_max), np.float32)
    din_last = wg_last.shape[0]
    w_last[0, :din_last] = np.asarray(wg_last).reshape(-1)
    w_last[1, :din_last] = np.asarray(wl_last).reshape(-1)
    b_last = np.asarray(bg_last, np.float32).reshape(1, 1)
    # TODO(synk): at production sizes (indim~1033, ds1~1000) the uniform-Dmax
    # resident slab over-pads; stream per-layer weight blocks (extra grid axis
    # or pltpu.emit_pipeline) instead of keeping all layers resident.
    return (jnp.asarray(w_slab).astype(matmul_dtype), jnp.asarray(b_slab),
            jnp.asarray(w_last), jnp.asarray(b_last), d_max)


# pure-JAX reference with the SAME mixed precision as the kernel: hidden layers
# use `matmul_dtype` matmul operands (f32 accumulate), the final layer is f32.
def set_forward_ref(x, params, matmul_dtype=jnp.float32):
    x = jnp.asarray(x, jnp.float32)
    n_layers = len(params)
    for li, (wg, bg, wl) in enumerate(params):
        dt = jnp.float32 if li == n_layers - 1 else matmul_dtype
        xd = x.astype(dt)
        g = jnp.dot(xd, wg.astype(dt), preferred_element_type=jnp.float32) + bg
        lam = jnp.dot(xd, wl.astype(dt), preferred_element_type=jnp.float32)
        # Lambda(mean(x)) == mean(Lambda(x)) by linearity
        x = jax.nn.elu(g - jnp.mean(lam, axis=0, keepdims=True))
    return x


# ----------------------------------------------------------------------------
# DeepsetsHead.forward — host-side clustering glue + Pallas hot paths
# ----------------------------------------------------------------------------
def deepsets_head_forward(params, multi_bboxes, cls_score, last_layer_feats,
                          ds_cfg, img_shape, key):
    # TODO(synk): greedy IoU clustering / descending sort / randperm is
    # data-dependent control flow over ragged sets; kept as host-side numpy glue.
    iou_threshold = ds_cfg['iou_thresh']
    _ = ds_cfg['top_c'], ds_cfg['max_num']   # read (unused) as in the reference

    w_slab, b_slab, w_last, b_last, d_max = pack_params(params, MATMUL_DTYPE)

    inputs, input_labels, set_bboxes = [], [], []
    set_inputs_np = []
    classes = [1]

    bboxes_np = np.asarray(multi_bboxes, np.float32)
    scores_all = np.asarray(cls_score, np.float32)
    feats_np = np.asarray(last_layer_feats, np.float32)

    for c in classes:
        scores = scores_all[:, c]
        inds = np.argsort(-scores)           # descending sort
        scores = scores[inds]
        bboxes = bboxes_np[inds]
        feats = feats_np[inds]

        ious = np.asarray(jax.device_get(
            bbox_overlaps_pallas(jnp.asarray(bboxes), jnp.asarray(bboxes))))

        is_clustered = np.ones(ious.shape[0], np.float32)
        sets = []
        for j in range(ious.shape[0]):
            row = ious[j]
            if is_clustered[j] == 1:
                m = (row > iou_threshold).astype(np.float32) * is_clustered
                selected = np.nonzero(m)[0]
                is_clustered *= np.where(row > iou_threshold, 0.0, 1.0)
                sets.append(selected)

        for sel in sets:
            if sel.size <= 1:   # torch .squeeze() -> 0-dim tensor -> skipped
                continue
            b = bboxes[sel]
            x1 = b[:, 0:1] / img_shape[1]
            x2 = b[:, 2:3] / img_shape[1]
            y1 = b[:, 1:2] / img_shape[0]
            y2 = b[:, 3:4] / img_shape[0]
            width = (x2 - x1) / img_shape[1]      # reproduces reference double-normalization
            height = (y2 - y1) / img_shape[0]
            area = width * height
            aspect = width / (height + sys.float_info.epsilon)
            inp = np.concatenate(
                [b, feats[sel], width, height, aspect, area, scores[sel][:, None]],
                axis=1).astype(np.float32)
            sb = b

            top_idx = np.argsort(-inp[:, -1])     # sort by score, descending
            inp, sb = inp[top_idx], sb[top_idx]

            key, sub = jax.random.split(key)
            perm = np.asarray(jax.random.permutation(sub, inp.shape[0]))
            inp, sb = inp[perm], sb[perm]

            set_bboxes.append(jnp.asarray(sb))
            inputs.append(jnp.asarray(inp))
            input_labels.append(c)
            set_inputs_np.append(inp)

    # ONE batched pallas_call for all sets, B sets per grid step.
    preds = []
    if set_inputs_np:
        num_sets = len(set_inputs_np)
        lens = np.array([s.shape[0] for s in set_inputs_np], np.int32)
        n_pad = max(SET_PAD, _round_up(int(lens.max()), SET_PAD))
        indim = set_inputs_np[0].shape[1]

        bsz = min(MAX_SETS_PER_STEP, num_sets)
        if num_sets >= 2:                         # keep >=2 grid steps (v7x: 2 TCs)
            bsz = max(1, min(bsz, (num_sets + 1) // 2))
        s_pad = _round_up(num_sets, bsz)

        x_b = np.zeros((s_pad, n_pad, d_max), np.float32)
        mask_b = np.zeros((s_pad, n_pad, 1), np.float32)
        inv_b = np.ones((s_pad, 1, 1), np.float32)
        for si, inp in enumerate(set_inputs_np):
            ln = inp.shape[0]
            x_b[si, :ln, :indim] = inp
            mask_b[si, :ln, 0] = 1.0
            inv_b[si, 0, 0] = 1.0 / max(ln, 1)

        out = set_forward_batched(
            jnp.asarray(x_b).astype(MATMUL_DTYPE),   # bf16 activations: 2x less DMA
            jnp.asarray(mask_b), jnp.asarray(inv_b),
            w_slab, b_slab, w_last, b_last, bsz)
        for si in range(num_sets):
            preds.append(out[si, 0, :int(lens[si])][:, None])   # (n, 1) like torch

    return inputs, preds, input_labels, set_bboxes


# ----------------------------------------------------------------------------
if __name__ == "__main__":
    key = jax.random.PRNGKey(0)
    k_param, k_jit, k_score, k_feat, k_fwd = jax.random.split(key, 5)

    # Small DeepsetsHead: indim = 4 (box) + feat_dim + 5 (w,h,aspect,area,score)
    feat_dim = 23
    indim = 4 + feat_dim + 5          # = 32
    params = init_deepsets_head(k_param, indim=indim, ds1=32, ds2=32, ds3=16, ds4=16)

    # Build 16 proposal boxes inside a 64x64 image: 3 tight clusters + 1 stray.
    img_shape = (64.0, 64.0)          # (H, W)
    base = np.array([
        [5.0, 5.0, 25.0, 25.0],
        [30.0, 30.0, 50.0, 55.0],
        [10.0, 40.0, 30.0, 58.0],
    ], np.float32)
    boxes = []
    for i in range(3):
        boxes.append(np.tile(base[i], (5, 1)))
    boxes.append(np.array([[2.0, 50.0, 10.0, 60.0]], np.float32))  # stray
    boxes = np.concatenate(boxes, axis=0)                          # (16, 4)
    jitter = np.asarray(jax.random.uniform(k_jit, boxes.shape, jnp.float32, -1.0, 1.0))
    multi_bboxes = jnp.asarray(boxes + jitter)

    num_boxes = multi_bboxes.shape[0]
    cls_score = jax.random.uniform(k_score, (num_boxes, 2), jnp.float32, 0.0, 1.0)
    last_layer_feats = jax.random.normal(k_feat, (num_boxes, feat_dim), jnp.float32)

    ds_cfg = {'top_c': 1, 'max_num': 100, 'iou_thresh': 0.5}

    inputs, preds, input_labels, set_bboxes = deepsets_head_forward(
        params, multi_bboxes, cls_score, last_layer_feats, ds_cfg, img_shape, k_fwd)

    assert len(preds) >= 1, "expected at least one clustered set"
    for p in preds:
        jax.block_until_ready(p)

    # Numerical check of the batched/fused set_forward kernel against a pure-JAX
    # reference with matching mixed precision (bf16 hidden matmuls, f32 final).
    tol = 1e-4 if MATMUL_DTYPE == jnp.float32 else 1e-2
    for inp, p in zip(inputs, preds):
        ref_pred = np.asarray(set_forward_ref(inp, params, MATMUL_DTYPE))
        got_pred = np.asarray(p)
        assert got_pred.shape == ref_pred.shape, (got_pred.shape, ref_pred.shape)
        assert np.allclose(got_pred, ref_pred, atol=tol, rtol=tol), "set_forward mismatch"

    # Numerical check of the tiled IoU kernel (NR-refined reciprocal).
    b_np = np.asarray(multi_bboxes)
    lt = np.maximum(b_np[:, None, :2], b_np[None, :, :2])
    rb = np.minimum(b_np[:, None, 2:], b_np[None, :, 2:])
    wh = np.clip(rb - lt + 1.0, 0.0, None)
    ov = wh[..., 0] * wh[..., 1]
    a = (b_np[:, 2] - b_np[:, 0] + 1.0) * (b_np[:, 3] - b_np[:, 1] + 1.0)
    ref_iou = ov / (a[:, None] + a[None, :] - ov)
    got_iou = np.asarray(jax.device_get(bbox_overlaps_pallas(multi_bboxes, multi_bboxes)))
    assert got_iou.shape == ref_iou.shape
    assert np.allclose(got_iou, ref_iou, atol=1e-4, rtol=1e-4), "bbox_overlaps mismatch"

    print("KERNEL_OK")
</pallas_src>

<mosaic_0001>
module attributes {stable_mosaic.version = 11 : i64} {
  func.func @_iou_kernel(%arg0: i32, %arg1: i32, %arg2: memref<16x4xf32, #tpu.memory_space<vmem>>, %arg3: memref<4x128xf32, #tpu.memory_space<vmem>>, %arg4: memref<16x128xf32, #tpu.memory_space<vmem>>) attributes {dimension_semantics = [#tpu.dimension_semantics<parallel>, #tpu.dimension_semantics<parallel>], iteration_bounds = array<i64: 1, 1>, scalar_prefetch = 0 : i64, scratch_operands = 0 : i64, tpu.core_type = #tpu.core_type<tc>, window_params = [{transform_indices = @transform_0, window_bounds = array<i64: 16, 4>}, {transform_indices = @transform_1, window_bounds = array<i64: 4, 128>}, {transform_indices = @transform_2, window_bounds = array<i64: 16, 128>}]} {
    %c0 = arith.constant 0 : index
    %c0_0 = arith.constant 0 : index
    %0 = vector.load %arg2[%c0, %c0_0] : memref<16x4xf32, #tpu.memory_space<vmem>>, vector<16x4xf32>
    %c0_1 = arith.constant 0 : index
    %c0_2 = arith.constant 0 : index
    %1 = vector.load %arg3[%c0_1, %c0_2] : memref<4x128xf32, #tpu.memory_space<vmem>>, vector<4x128xf32>
    %2 = vector.extract_strided_slice %0 {offsets = [0, 0], sizes = [16, 1], strides = [1, 1]} : vector<16x4xf32> to vector<16x1xf32>
    %3 = vector.extract_strided_slice %0 {offsets = [0, 1], sizes = [16, 1], strides = [1, 1]} : vector<16x4xf32> to vector<16x1xf32>
    %4 = vector.extract_strided_slice %0 {offsets = [0, 2], sizes = [16, 1], strides = [1, 1]} : vector<16x4xf32> to vector<16x1xf32>
    %5 = vector.extract_strided_slice %0 {offsets = [0, 3], sizes = [16, 1], strides = [1, 1]} : vector<16x4xf32> to vector<16x1xf32>
    %6 = vector.extract_strided_slice %1 {offsets = [0, 0], sizes = [1, 128], strides = [1, 1]} : vector<4x128xf32> to vector<1x128xf32>
    %7 = vector.extract_strided_slice %1 {offsets = [1, 0], sizes = [1, 128], strides = [1, 1]} : vector<4x128xf32> to vector<1x128xf32>
    %8 = vector.extract_strided_slice %1 {offsets = [2, 0], sizes = [1, 128], strides = [1, 1]} : vector<4x128xf32> to vector<1x128xf32>
    %9 = vector.extract_strided_slice %1 {offsets = [3, 0], sizes = [1, 128], strides = [1, 1]} : vector<4x128xf32> to vector<1x128xf32>
    %10 = vector.broadcast %2 : vector<16x1xf32> to vector<16x128xf32>
    %11 = vector.broadcast %6 : vector<1x128xf32> to vector<16x128xf32>
    %12 = arith.maximumf %10, %11 : vector<16x128xf32>
    %13 = vector.broadcast %3 : vector<16x1xf32> to vector<16x128xf32>
    %14 = vector.broadcast %7 : vector<1x128xf32> to vector<16x128xf32>
    %15 = arith.maximumf %13, %14 : vector<16x128xf32>
    %16 = vector.broadcast %4 : vector<16x1xf32> to vector<16x128xf32>
    %17 = vector.broadcast %8 : vector<1x128xf32> to vector<16x128xf32>
    %18 = arith.minimumf %16, %17 : vector<16x128xf32>
    %19 = vector.broadcast %5 : vector<16x1xf32> to vector<16x128xf32>
    %20 = vector.broadcast %9 : vector<1x128xf32> to vector<16x128xf32>
    %21 = arith.minimumf %19, %20 : vector<16x128xf32>
    %22 = arith.subf %18, %12 : vector<16x128xf32>
    %cst = arith.constant 1.000000e+00 : f32
    %23 = vector.broadcast %cst : f32 to vector<16x128xf32>
    %24 = arith.addf %22, %23 : vector<16x128xf32>
    %cst_3 = arith.constant 0.000000e+00 : f32
    %25 = vector.broadcast %cst_3 : f32 to vector<16x128xf32>
    %26 = arith.maximumf %24, %25 : vector<16x128xf32>
    %27 = arith.subf %21, %15 : vector<16x128xf32>
    %cst_4 = arith.constant 1.000000e+00 : f32
    %28 = vector.broadcast %cst_4 : f32 to vector<16x128xf32>
    %29 = arith.addf %27, %28 : vector<16x128xf32>
    %cst_5 = arith.constant 0.000000e+00 : f32
    %30 = vector.broadcast %cst_5 : f32 to vector<16x128xf32>
    %31 = arith.maximumf %29, %30 : vector<16x128xf32>
    %32 = arith.mulf %26, %31 : vector<16x128xf32>
    %33 = arith.subf %4, %2 : vector<16x1xf32>
    %cst_6 = arith.constant 1.000000e+00 : f32
    %34 = vector.broadcast %cst_6 : f32 to vector<16x1xf32>
    %35 = arith.addf %33, %34 : vector<16x1xf32>
    %36 = arith.subf %5, %3 : vector<16x1xf32>
    %cst_7 = arith.constant 1.000000e+00 : f32
    %37 = vector.broadcast %cst_7 : f32 to vector<16x1xf32>
    %38 = arith.addf %36, %37 : vector<16x1xf32>
    %39 = arith.mulf %35, %38 : vector<16x1xf32>
    %40 = arith.subf %8, %6 : vector<1x128xf32>
    %cst_8 = arith.constant 1.000000e+00 : f32
    %41 = vector.broadcast %cst_8 : f32 to vector<1x128xf32>
    %42 = arith.addf %40, %41 : vector<1x128xf32>
    %43 = arith.subf %9, %7 : vector<1x128xf32>
    %cst_9 = arith.constant 1.000000e+00 : f32
    %44 = vector.broadcast %cst_9 : f32 to vector<1x128xf32>
    %45 = arith.addf %43, %44 : vector<1x128xf32>
    %46 = arith.mulf %42, %45 : vector<1x128xf32>
    %47 = vector.broadcast %39 : vector<16x1xf32> to vector<16x128xf32>
    %48 = vector.broadcast %46 : vector<1x128xf32> to vector<16x128xf32>
    %49 = arith.addf %47, %48 : vector<16x128xf32>
    %50 = arith.subf %49, %32 : vector<16x128xf32>
    %51 = tpu.reciprocal %50 {approx = true} : vector<16x128xf32> -> vector<16x128xf32>
    %52 = arith.mulf %50, %51 : vector<16x128xf32>
    %cst_10 = arith.constant 2.000000e+00 : f32
    %53 = vector.broadcast %cst_10 : f32 to vector<16x128xf32>
    %54 = arith.subf %53, %52 : vector<16x128xf32>
    %55 = arith.mulf %51, %54 : vector<16x128xf32>
    %56 = arith.mulf %32, %55 : vector<16x128xf32>
    %c0_11 = arith.constant 0 : index
    %c0_12 = arith.constant 0 : index
    %57 = vector.load %arg4[%c0_11, %c0_12] : memref<16x128xf32, #tpu.memory_space<vmem>>, vector<16x128xf32>
    tpu.vector_store %arg4[%c0_11, %c0_12], %56 {strides = array<i32>} : memref<16x128xf32, #tpu.memory_space<vmem>>, vector<16x128xf32>,
    return
  }
  func.func @transform_0(%arg0: i32, %arg1: i32) -> (i32, i32) {
    %c0_i32 = arith.constant 0 : i32
    %c0_i32_0 = arith.constant 0 : i32
    return %arg0, %c0_i32 : i32, i32
  }
  func.func @transform_1(%arg0: i32, %arg1: i32) -> (i32, i32) {
    %c0_i32 = arith.constant 0 : i32
    %c0_i32_0 = arith.constant 0 : i32
    return %c0_i32, %arg1 : i32, i32
  }
  func.func @transform_2(%arg0: i32, %arg1: i32) -> (i32, i32) {
    %c0_i32 = arith.constant 0 : i32
    return %arg0, %arg1 : i32, i32
  }
}

</mosaic_0001>

<llo_original>
// kernel: tpu_custom_call.1
$region0: #{tpu_custom_call.1}
  #allocation0 [shape = 'u32[]', space=smem, size = 0x4, offset = 0x4, fixed_abs, tag = 'smem constant byte address 0x4 - core index']
  #allocation1 [shape = 'u32[144,128]{1,0:T(1,128)}', space=vmem, size = 0x12000, scoped, tag = 'internal scratch']
  %s0 = inlined_call_operand.vmem [shape: f32[16,4], index: 0, kind: input, shape index: {}]
  %s1 = inlined_call_operand.vmem [shape: f32[4,128], index: 1, kind: input, shape index: {}]
  %s2 = inlined_call_operand.hbm [shape: f32[16,128], index: 2, kind: output, shape index: {}]
  %s3 = sld [smem:[#allocation0]]
  $region18: #{tpu_custom_call.1} parent=0
    _
  %s5 = ssub.s32 1, %s3
  %s6 = scalar_select 0, %s5, %s3
  $region1: #{tpu_custom_call.1} parent=0
    #allocation2 [shape = 'u8[8192]{0}', space=vmem, size = 0x2000, scoped, tag = 'output window, operand 0, single buffered']
    #allocation3 [shape = 's32[1]{0}', space=sflag, size = 0x4, scoped, tag = 'scoped memory for tpu_custom_call.1']
    %7 = vsyncpa [#allocation3], 0
    // Predicated region
    $region2: #{tpu_custom_call.1} parent=1 // pred_check
      _
    $region3: #{tpu_custom_call.1} parent=1 // pred_check_branch
      %9 = sbr.rel (0) target = $region5
    $region4: #{tpu_custom_call.1} parent=1 // pred_region
      _
    $region5: #{tpu_custom_call.1} parent=1 // pred_fallthru
      _
    // Predicated region
    $region6: #{tpu_custom_call.1} parent=1 // pred_check
      _
    $region7: #{tpu_custom_call.1} parent=1 // pred_check_branch
      %11 = sbr.rel (0) target = $region9
    $region8: #{tpu_custom_call.1} parent=1 // pred_region
      _
    $region9: #{tpu_custom_call.1} parent=1 // pred_fallthru
      _
    %v12 = vld [vmem:[%s0] sm:$0xff]
    %v13 = vld [vmem:[%s0 + $0x8] sm:$0xff]
    %v14 = vld [vmem:[%s1] sm:$0xf]
    %16 = vset.pattern.permute.xlu0 0
    %17 = vperm.xlu0 %16, %v12
    %v18 = vpop.permute.xlu0 %17
    %21 = vset.pattern.permute.xlu0 0
    %22 = vperm.xlu0 %21, %v13
    %v23 = vpop.permute.xlu0 %22
    %v25 = vlaneseq
    %v26 = vshrl.u32 %v25, 7
    %v27 = vsub.s32 0, %v26
    %v28 = vrot.slane %v14, %v27
    %v29 = vmax.f32 %v18, %v28
    %v30 = vmax.f32 %v23, %v28
    %31 = vset.pattern.permute.xlu0 1
    %32 = vperm.xlu0 %31, %v12
    %v33 = vpop.permute.xlu0 %32
    %35 = vset.pattern.permute.xlu0 1
    %36 = vperm.xlu0 %35, %v13
    %v37 = vpop.permute.xlu0 %36
    %v39 = vlaneseq
    %v40 = vshrl.u32 %v39, 7
    %v41 = vsub.s32 1, %v40
    %v42 = vrot.slane %v14, %v41
    %v43 = vmax.f32 %v33, %v42
    %v44 = vmax.f32 %v37, %v42
    %45 = vset.pattern.permute.xlu0 2
    %46 = vperm.xlu0 %45, %v12
    %v47 = vpop.permute.xlu0 %46
    %49 = vset.pattern.permute.xlu0 2
    %50 = vperm.xlu0 %49, %v13
    %v51 = vpop.permute.xlu0 %50
    %v53 = vlaneseq
    %v54 = vshrl.u32 %v53, 7
    %v55 = vsub.s32 2, %v54
    %v56 = vrot.slane %v14, %v55
    %v57 = vmin.f32 %v47, %v56
    %v58 = vmin.f32 %v51, %v56
    %59 = vset.pattern.permute.xlu0 3
    %60 = vperm.xlu0 %59, %v12
    %v61 = vpop.permute.xlu0 %60
    %63 = vset.pattern.permute.xlu0 3
    %64 = vperm.xlu0 %63, %v13
    %v65 = vpop.permute.xlu0 %64
    %v67 = vlaneseq
    %v68 = vshrl.u32 %v67, 7
    %v69 = vsub.s32 3, %v68
    %v70 = vrot.slane %v14, %v69
    %v71 = vmin.f32 %v61, %v70
    %v72 = vmin.f32 %v65, %v70
    %v73 = vsub.f32 %v57, %v29
    %v74 = vsub.f32 %v58, %v30
    %v75 = vadd.f32 %v73, 1.0
    %v76 = vadd.f32 %v74, 1.0
    %v77 = vmax.f32 %v75, 0.0
    %v78 = vmax.f32 %v76, 0.0
    %v79 = vsub.f32 %v71, %v43
    %v80 = vsub.f32 %v72, %v44
    %v81 = vadd.f32 %v79, 1.0
    %v82 = vadd.f32 %v80, 1.0
    %v83 = vmax.f32 %v81, 0.0
    %v84 = vmax.f32 %v82, 0.0
    %v85 = vmul.f32 %v77, %v83
    %v86 = vmul.f32 %v78, %v84
    %87 = vrot.lane.b32.xlu0 %v12, 2
    %v88 = vpop.permute.xlu0 %87
    %89 = vrot.lane.b32.xlu0 %v13, 2
    %v90 = vpop.permute.xlu0 %89
    %v93 = vsub.f32 %v12, %v88
    %v94 = vsub.f32 %v13, %v90
    %v95 = vadd.f32 %v93, 1.0
    %v96 = vadd.f32 %v94, 1.0
    %99 = vrot.lane.b32.xlu0 %v95, 127
    %v100 = vpop.permute.xlu0 %99
    %101 = vrot.lane.b32.xlu0 %v96, 127
    %v102 = vpop.permute.xlu0 %101
    %v105 = vmul.f32 %v95, %v100
    %v106 = vmul.f32 %v96, %v102
    %v108 = vrot.slane %v14, 6
    %v110 = vsub.f32 %v14, %v108
    %v111 = vadd.f32 %v110, 1.0
    %v113 = vrot.slane %v111, 1
    %v115 = vmul.f32 %v111, %v113
    %117 = vset.pattern.permute.xlu0 2
    %118 = vperm.xlu0 %117, %v105
    %v119 = vpop.permute.xlu0 %118
    %122 = vset.pattern.permute.xlu0 2
    %123 = vperm.xlu0 %122, %v106
    %v124 = vpop.permute.xlu0 %123
    %v126 = vlaneseq
    %v127 = vshrl.u32 %v126, 7
    %v128 = vsub.s32 2, %v127
    %v129 = vrot.slane %v115, %v128
    %v130 = vadd.f32 %v119, %v129
    %v131 = vadd.f32 %v124, %v129
    %v132 = vsub.f32 %v130, %v85
    %v133 = vsub.f32 %v131, %v86
    %v134 = vrcp.pop %v132
    %v135 = vrcp.pop %v133
    %v136 = vmul.f32 %v132, %v134
    %v137 = vmul.f32 %v133, %v135
    %v138 = vsub.f32 2.0, %v136
    %v139 = vsub.f32 2.0, %v137
    %v140 = vmul.f32 %v134, %v138
    %v141 = vmul.f32 %v135, %v139
    %v142 = vmul.f32 %v85, %v140
    %v143 = vmul.f32 %v86, %v141
    %144 = vst [vmem:[#allocation2] sm:$0xff] %v142
    %145 = vst [vmem:[#allocation2 + $0x8] sm:$0xff] %v143
    // Predicated region
    $region10: #{tpu_custom_call.1} parent=1 // pred_check
      _
    $region11: #{tpu_custom_call.1} parent=1 // pred_check_branch
      %147 = sbr.rel (0) target = $region13
    $region12: #{tpu_custom_call.1} parent=1 // pred_region
      %s149 = ssub.s32 256, 256
      %150 = vsyncadd [#allocation3], %s149
      %s151 = sshll.u32 [#allocation2], 4
      %s152 = int_to_ptr.vmem [resolvable:$true] %s151
      %157 = dma.vmem_to_hbm [thread:$0]  %s152, 256, %s2, [#allocation3], 128, 128, 8
    $region13: #{tpu_custom_call.1} parent=1 // pred_fallthru
      _
    // Predicated region
    $region14: #{tpu_custom_call.1} parent=1 // pred_check
      _
    $region15: #{tpu_custom_call.1} parent=1 // pred_check_branch
      %159 = sbr.rel (0) target = $region17
    $region16: #{tpu_custom_call.1} parent=1 // pred_region
      %160 = dma.done [#allocation3], 256
    $region17: #{tpu_custom_call.1} parent=1 // pred_fallthru
      _
    %161 = vsyncpa [#allocation3], 1

</llo_original>
